<compile_context>
chip_gen: v7x
topology: tpu7x:2x2x1
jax: 0.10.0
libtpu: 0.0.40
codegen_flags: <defaults>
</compile_context>

<pallas_src>
import jax
import jax.numpy as jnp
from jax.experimental import pallas as pl
from jax.experimental.pallas import tpu as pltpu


def _ipeps_double_layer_kernel(a_ref, s_ref, asym_ref, gram_ref):
    """Symmetrize A1, normalize, and build the double-layer Gram matrix.

    a_ref    : (d, D^3)   raw A1, virtual legs flattened onto the lane axis
    s_ref    : (D^3, D^3) symmetrization matrix S = I + P1 + P2 (column perms)
    asym_ref : (d, D^3)   output, A1symm = (A1 @ S) / ||A1 @ S||_F
    gram_ref : (D^3, D^3) output, G[efg, abc] = sum_m A1symm[m,efg]*A1symm[m,abc]
    """
    a = a_ref[...]          # (d, D3)
    s = s_ref[...]          # (D3, D3)

    # In-kernel symmetrization: one MXU matmul replaces the wrapper-side
    # transpose+add fusion (review item 2).  The MXU is otherwise idle.
    asym = jax.lax.dot_general(
        a, s, (((1,), (0,)), ((), ())), preferred_element_type=jnp.float32)   # (d, D3)
    # Same product in the opposite orientation, asymT[k, m] == asym[m, k].
    # A second matmul on the idle MXU avoids any explicit (d,D3)->(D3,d)
    # relayout before the VPU outer product below.
    asymT = jax.lax.dot_general(
        s, a, (((0,), (1,)), ((), ())), preferred_element_type=jnp.float32)   # (D3, d)

    # Frobenius normalization; rsqrt runs on the EUP slot.
    inv_nrm = jax.lax.rsqrt(jnp.sum(asym * asym))
    an = asym * inv_nrm      # (d, D3)
    anT = asymT * inv_nrm    # (D3, d)
    asym_ref[...] = an

    # Double-layer contraction over the physical index m (d = 2) as a VPU
    # outer-product sum instead of a K=2 MXU dot (review item 4).  conj() is
    # the identity for real f32.
    gram_ref[...] = anT[:, 0:1] * an[0:1, :] + anT[:, 1:2] * an[1:2, :]


@jax.jit
def symmetrize_and_double_layer(A1):
    """Returns (A1symm, Ta): A1symm (d,D,D,D) and Ta (D^2, D^2, D^2)."""
    d, D = A1.shape[0], A1.shape[1]
    D3 = D * D * D

    # --- trace-time constants (folded by jit; no runtime dispatch) ---------
    # Column-source indices of the two cyclic virtual-leg permutations
    # (0,2,3,1) and (0,3,1,2) acting on the flattened (D,D,D) legs, folded
    # with the identity into one symmetrization matrix S:
    #   (A1_flat @ S)[:, k] = A1_flat[:, k] + A1_flat[:, q1[k]] + A1_flat[:, q2[k]]
    idx = jnp.arange(D3, dtype=jnp.int32).reshape(D, D, D)
    q1 = jnp.transpose(idx, (1, 2, 0)).reshape(D3)   # virtual part of (0,2,3,1)
    q2 = jnp.transpose(idx, (2, 0, 1)).reshape(D3)   # virtual part of (0,3,1,2)
    cols = jnp.arange(D3, dtype=jnp.int32)
    S = ((cols[:, None] == cols[None, :]).astype(jnp.float32)
         + (cols[:, None] == q1[None, :]).astype(jnp.float32)
         + (cols[:, None] == q2[None, :]).astype(jnp.float32))       # (D3, D3)

    a_flat = A1.reshape(d, D3).astype(jnp.float32)   # free row-major reshape

    # ~45 KFLOP, ~34 KB of traffic — tell XLA the call is tiny (review item 7).
    cost = pl.CostEstimate(
        flops=2 * (2 * d * D3 * D3) + 3 * D3 * D3,
        transcendentals=1,
        bytes_accessed=8 * (d * D3 + D3 * D3),
    )

    # Single invocation, no grid, whole arrays resident in VMEM (review item 1).
    asym_n, gram = pl.pallas_call(
        _ipeps_double_layer_kernel,
        in_specs=[pl.BlockSpec(memory_space=pltpu.MemorySpace.VMEM),
                  pl.BlockSpec(memory_space=pltpu.MemorySpace.VMEM)],
        out_specs=(pl.BlockSpec(memory_space=pltpu.MemorySpace.VMEM),
                   pl.BlockSpec(memory_space=pltpu.MemorySpace.VMEM)),
        out_shape=(jax.ShapeDtypeStruct((d, D3), jnp.float32),
                   jax.ShapeDtypeStruct((D3, D3), jnp.float32)),
        cost_estimate=cost,
    )(a_flat, S)

    A1symm = asym_n.reshape(d, D, D, D)
    # Review items 3/5 (documented trade-off): the (e,f,g,a,b,c)->(e,a,f,b,g,c)
    # interleave is pure cross-operand data movement that no dot_general layout
    # can emit and whose sub-(8,128)-tile in-kernel realizations are not
    # reliably lowerable in Mosaic at D=4; it stays as one XLA op on the 16 KB
    # gram inside this jit.  Downstream consumers should prefer `gram`'s
    # lane-dense (D^3, D^3) layout over the (D^2,D^2,D^2) view.
    Ta = gram.reshape(D, D, D, D, D, D).transpose(0, 3, 1, 4, 2, 5).reshape(
        D * D, D * D, D * D)
    return A1symm, Ta


def honeycomb_ipeps_forward(A1, H, Mpx, Mpy, Mpz, chi, Niter):
    A1symm, Ta = symmetrize_and_double_layer(A1)
    A2symm = A1symm          # module sets A2symm = A1symm
    Tb = Ta                  # hence Tb == Ta
    del A2symm, H, Mpx, Mpy, Mpz, chi, Niter
    # TODO(synk): CTMRG_honeycomb and get_obs_honeycomb are external functions
    # not provided with the module; the environment fixed point and the final
    # (loss, Mx, My, Mz) observables cannot be reproduced without their source.
    return A1symm, Ta, Tb


if __name__ == "__main__":
    # small, module-consistent sizes: d=2 physical dim, D=4 bond dim
    d, D, chi, Niter = 2, 4, 16, 2
    key = jax.random.PRNGKey(0)

    # deterministic parameter init, mirroring __init__: abs(rand), normalized
    B1 = jnp.abs(jax.random.uniform(key, (d, D, D, D), dtype=jnp.float32))
    A1 = B1 / jnp.linalg.norm(B1)

    # forward-call inputs (only consumed by the unavailable CTMRG/obs path)
    sx = jnp.array([[0.0, 1.0], [1.0, 0.0]], jnp.float32)
    sz = jnp.array([[1.0, 0.0], [0.0, -1.0]], jnp.float32)
    isy = jnp.array([[0.0, 1.0], [-1.0, 0.0]], jnp.float32)  # i*sigma_y (real)
    H = jnp.stack([jnp.kron(sx, sx), jnp.kron(isy, isy), jnp.kron(sz, sz)])
    Mpx, Mpy, Mpz = sx, isy, sz

    A1symm, Ta, Tb = honeycomb_ipeps_forward(A1, H, Mpx, Mpy, Mpz, chi, Niter)
    jax.block_until_ready((A1symm, Ta, Tb))

    # correctness check against a plain-JAX reference of the same math
    asym_ref = A1 + jnp.transpose(A1, (0, 2, 3, 1)) + jnp.transpose(A1, (0, 3, 1, 2))
    asym_ref = asym_ref / jnp.linalg.norm(asym_ref)
    Ta_ref = jnp.einsum('mefg,mabc->eafbgc', asym_ref, asym_ref).reshape(
        D * D, D * D, D * D)
    assert jnp.allclose(A1symm, asym_ref, atol=1e-6, rtol=1e-6)
    assert jnp.allclose(Ta, Ta_ref, atol=1e-6, rtol=1e-6)
    assert jnp.allclose(Tb, Ta_ref, atol=1e-6, rtol=1e-6)

    print("KERNEL_OK")
</pallas_src>

<mosaic_0001>
module attributes {stable_mosaic.version = 11 : i64} {
  func.func @_ipeps_double_layer_kernel(%arg0: memref<2x64xf32, #tpu.memory_space<vmem>>, %arg1: memref<64x64xf32, #tpu.memory_space<vmem>>, %arg2: memref<2x64xf32, #tpu.memory_space<vmem>>, %arg3: memref<64x64xf32, #tpu.memory_space<vmem>>) attributes {dimension_semantics = [], scalar_prefetch = 0 : i64, scratch_operands = 0 : i64, tpu.core_type = #tpu.core_type<tc>} {
    %c0 = arith.constant 0 : index
    %c0_0 = arith.constant 0 : index
    %0 = vector.load %arg0[%c0, %c0_0] : memref<2x64xf32, #tpu.memory_space<vmem>>, vector<2x64xf32>
    %c0_1 = arith.constant 0 : index
    %c0_2 = arith.constant 0 : index
    %1 = vector.load %arg1[%c0_1, %c0_2] : memref<64x64xf32, #tpu.memory_space<vmem>>, vector<64x64xf32>
    %cst = arith.constant dense<0.000000e+00> : vector<2x64xf32>
    %2 = tpu.matmul %0, %1, %cst {dimension_numbers = #tpu.dot_dimension_numbers<[1], [0], [0], [1], [0, 0, 1, 1], [], []>} : vector<2x64xf32>, vector<64x64xf32>, vector<2x64xf32> -> vector<2x64xf32>
    %cst_3 = arith.constant dense<0.000000e+00> : vector<64x2xf32>
    %3 = tpu.matmul %1, %0, %cst_3 {dimension_numbers = #tpu.dot_dimension_numbers<[0], [1], [1], [0], [0, 1, 1, 0], [], []>} : vector<64x64xf32>, vector<2x64xf32>, vector<64x2xf32> -> vector<64x2xf32>
    %4 = arith.mulf %2, %2 : vector<2x64xf32>
    %5 = vector.shape_cast %4 : vector<2x64xf32> to vector<1x2x64xf32>
    %cst_4 = arith.constant dense<0.000000e+00> : vector<1xf32>
    %6 = vector.multi_reduction <add>, %5, %cst_4 [1, 2] : vector<1x2x64xf32> to vector<1xf32>
    %7 = vector.shape_cast %6 : vector<1xf32> to vector<1x1x1xf32>
    %8 = vector.extract %7[0, 0, 0] : f32 from vector<1x1x1xf32>
    %9 = math.rsqrt %8 : f32
    %10 = vector.broadcast %9 : f32 to vector<2x64xf32>
    %11 = arith.mulf %2, %10 : vector<2x64xf32>
    %12 = vector.broadcast %9 : f32 to vector<64x2xf32>
    %13 = arith.mulf %3, %12 : vector<64x2xf32>
    %c0_5 = arith.constant 0 : index
    %c0_6 = arith.constant 0 : index
    %14 = vector.load %arg2[%c0_5, %c0_6] : memref<2x64xf32, #tpu.memory_space<vmem>>, vector<2x64xf32>
    tpu.vector_store %arg2[%c0_5, %c0_6], %11 {strides = array<i32>} : memref<2x64xf32, #tpu.memory_space<vmem>>, vector<2x64xf32>,
    %15 = vector.extract_strided_slice %13 {offsets = [0, 0], sizes = [64, 1], strides = [1, 1]} : vector<64x2xf32> to vector<64x1xf32>
    %16 = vector.extract_strided_slice %11 {offsets = [0, 0], sizes = [1, 64], strides = [1, 1]} : vector<2x64xf32> to vector<1x64xf32>
    %17 = vector.broadcast %15 : vector<64x1xf32> to vector<64x64xf32>
    %18 = vector.broadcast %16 : vector<1x64xf32> to vector<64x64xf32>
    %19 = arith.mulf %17, %18 : vector<64x64xf32>
    %20 = vector.extract_strided_slice %13 {offsets = [0, 1], sizes = [64, 1], strides = [1, 1]} : vector<64x2xf32> to vector<64x1xf32>
    %21 = vector.extract_strided_slice %11 {offsets = [1, 0], sizes = [1, 64], strides = [1, 1]} : vector<2x64xf32> to vector<1x64xf32>
    %22 = vector.broadcast %20 : vector<64x1xf32> to vector<64x64xf32>
    %23 = vector.broadcast %21 : vector<1x64xf32> to vector<64x64xf32>
    %24 = arith.mulf %22, %23 : vector<64x64xf32>
    %25 = arith.addf %19, %24 : vector<64x64xf32>
    %c0_7 = arith.constant 0 : index
    %c0_8 = arith.constant 0 : index
    %26 = vector.load %arg3[%c0_7, %c0_8] : memref<64x64xf32, #tpu.memory_space<vmem>>, vector<64x64xf32>
    tpu.vector_store %arg3[%c0_7, %c0_8], %25 {strides = array<i32>} : memref<64x64xf32, #tpu.memory_space<vmem>>, vector<64x64xf32>,
    return
  }
}

</mosaic_0001>

<llo_original>
// kernel: symmetrize_and_double_layer.1
$region0: #{symmetrize_and_double_layer.1}
  #allocation0 [shape = 'u32[]', space=smem, size = 0x4, offset = 0x4, fixed_abs, tag = 'smem constant byte address 0x4 - core index']
  #allocation1 [shape = 'u32[144,128]{1,0:T(1,128)}', space=vmem, size = 0x12000, scoped, tag = 'internal scratch']
  %s0 = inlined_call_operand.vmem [shape: f32[2,64], index: 0, kind: input, shape index: {}]
  %s1 = inlined_call_operand.vmem [shape: f32[64,64], index: 1, kind: input, shape index: {}]
  %s2 = inlined_call_operand.vmem [shape: f32[2,64], index: 2, kind: output, shape index: {0}]
  %s3 = inlined_call_operand.vmem [shape: f32[64,64], index: 3, kind: output, shape index: {1}]
  %4 = xla_tuple %s2, %s3
  %s5 = sld [smem:[#allocation0]]
  $region26: #{symmetrize_and_double_layer.1} parent=0
    _
  %s7 = ssub.s32 1, %s5
  %s8 = scalar_select 0, %s7, %s5
  // Predicated region
  $region2: #{symmetrize_and_double_layer.1} parent=0 // pred_check
    _
  $region3: #{symmetrize_and_double_layer.1} parent=0 // pred_check_branch
    %10 = sbr.rel (0) target = $region5
  $region4: #{symmetrize_and_double_layer.1} parent=0 // pred_region
    _
  $region5: #{symmetrize_and_double_layer.1} parent=0 // pred_fallthru
    _
  // Predicated region
  $region6: #{symmetrize_and_double_layer.1} parent=0 // pred_check
    _
  $region7: #{symmetrize_and_double_layer.1} parent=0 // pred_check_branch
    %12 = sbr.rel (0) target = $region9
  $region8: #{symmetrize_and_double_layer.1} parent=0 // pred_region
    _
  $region9: #{symmetrize_and_double_layer.1} parent=0 // pred_fallthru
    _
  %v13 = vld [vmem:[%s0] sm:$0x3]
  %v14 = vld [vmem:[%s1] sm:$0xff]
  %v15 = vld [vmem:[%s1 + $0x8] sm:$0xff]
  %v16 = vld [vmem:[%s1 + $0x10] sm:$0xff]
  %v17 = vld [vmem:[%s1 + $0x18] sm:$0xff]
  %v18 = vld [vmem:[%s1 + $0x20] sm:$0xff]
  %v19 = vld [vmem:[%s1 + $0x28] sm:$0xff]
  %v20 = vld [vmem:[%s1 + $0x30] sm:$0xff]
  %v21 = vld [vmem:[%s1 + $0x38] sm:$0xff]
  %vm22 = vcmask 523264
  %v24 = vsel %vm22, %v13, 0
  %26 = vmatprep.subr.mxu0 0.0
  %27 = vmatpush1.msra.mxu0 %v14
  %28 = vmatprep.subr.mxu0 0.0
  %29 = vmatpush1.msra.mxu0 %v15
  %30 = vmatprep.subr.mxu0 0.0
  %31 = vmatpush1.msra.mxu0 %v16
  %32 = vmatprep.subr.mxu0 0.0
  %33 = vmatpush1.msra.mxu0 %v17
  %34 = vmatprep.subr.mxu0 0.0
  %35 = vmatpush1.msra.mxu0 %v18
  %36 = vmatprep.subr.mxu0 0.0
  %37 = vmatpush1.msra.mxu0 %v19
  %38 = vmatprep.subr.mxu0 0.0
  %39 = vmatpush1.msra.mxu0 %v20
  %40 = vmatprep.subr.mxu0 0.0
  %41 = vmatpush1.msra.mxu0 %v21
  %42 = vmatprep.subr.mxu0 0.0
  %43 = vmatpush1.msra.mxu0 0.0
  %44 = vmatprep.subr.mxu0 0.0
  %45 = vmatpush1.msra.mxu0 0.0
  %46 = vmatprep.subr.mxu0 0.0
  %47 = vmatpush1.msra.mxu0 0.0
  %48 = vmatprep.subr.mxu0 0.0
  %49 = vmatpush1.msra.mxu0 0.0
  %50 = vmatprep.subr.mxu0 0.0
  %51 = vmatpush1.msra.mxu0 0.0
  %52 = vmatprep.subr.mxu0 0.0
  %53 = vmatpush1.msra.mxu0 0.0
  %54 = vmatprep.subr.mxu0 0.0
  %55 = vmatpush1.msra.mxu0 0.0
  %56 = vmatprep.subr.mxu0 0.0
  %57 = vmatpush1.msra.mxu0 0.0
  %58 = vmatprep.subr.mxu0 0.0
  %59 = vmatpush1.msra.mxu0 0.0
  %60 = vmatprep.subr.mxu0 0.0
  %61 = vmatpush1.msra.mxu0 0.0
  %62 = vmatprep.subr.mxu0 0.0
  %63 = vmatpush1.msra.mxu0 0.0
  %64 = vmatprep.subr.mxu0 0.0
  %65 = vmatpush1.msra.mxu0 0.0
  %66 = vmatprep.subr.mxu0 0.0
  %67 = vmatpush1.msra.mxu0 0.0
  %68 = vmatprep.subr.mxu0 0.0
  %69 = vmatpush1.msra.mxu0 0.0
  %70 = vmatprep.subr.mxu0 0.0
  %71 = vmatpush1.msra.mxu0 0.0
  %72 = vmatprep.subr.mxu0 0.0
  %73 = vmatpush1.msra.mxu0 0.0
  %74 = vmatprep.subr.mxu0 0.0
  %75 = vmatpush1.msra.mxu0 0.0
  %76 = vmatprep.subr.mxu0 0.0
  %77 = vmatpush1.msra.mxu0 0.0
  %78 = vmatprep.subr.mxu0 0.0
  %79 = vmatpush1.msra.mxu0 0.0
  %80 = vmatprep.subr.mxu0 0.0
  %81 = vmatpush1.msra.mxu0 0.0
  %82 = vmatprep.subr.mxu0 0.0
  %83 = vmatpush1.msra.mxu0 0.0
  %84 = vmatprep.subr.mxu0 0.0
  %85 = vmatpush1.msra.mxu0 0.0
  %86 = vmatprep.subr.mxu0 0.0
  %87 = vmatpush1.msra.mxu0 0.0
  %88 = vmatprep.subr.mxu0 0.0
  %89 = vmatpush1.msra.mxu0 0.0
  %90 = vmatprep.mubr.f32.mxu0 0.0
  %91 = vmatmul.mubr.f32.gmra.mrb[0].mxu0 %v24
  %v92 = vpop.f32.mrb[0].mxu0
  %v93 = vadd.f32 0.0, %v92
  %v94 = vpop.f32.mrb[0].mxu0
  %95 = vdwg.mxu0
  %96 = vxpose.xlu0.b32.start [1/16] %v14, 128
  %97 = vxpose.xlu0.b32.cont [2/16] %v15, 128
  %98 = vxpose.xlu0.b32.cont [3/16] %v16, 128
  %99 = vxpose.xlu0.b32.cont [4/16] %v17, 128
  %100 = vxpose.xlu0.b32.cont [5/16] %v18, 128
  %101 = vxpose.xlu0.b32.cont [6/16] %v19, 128
  %102 = vxpose.xlu0.b32.cont [7/16] %v20, 128
  %103 = vxpose.xlu0.b32.cont [8/16] %v21, 128
  %104 = vxpose.xlu0.b32.cont [9/16] 0.0, 128
  %105 = vxpose.xlu0.b32.cont [10/16] 0.0, 128
  %106 = vxpose.xlu0.b32.cont [11/16] 0.0, 128
  %107 = vxpose.xlu0.b32.cont [12/16] 0.0, 128
  %108 = vxpose.xlu0.b32.cont [13/16] 0.0, 128
  %109 = vxpose.xlu0.b32.cont [14/16] 0.0, 128
  %110 = vxpose.xlu0.b32.cont [15/16] 0.0, 128
  %111 = vxpose.xlu0.b32.end [16/16] 0.0, 128
  %v112 = vpop.trf.xlu0
  %v113 = vpop.trf.xlu0
  %v114 = vpop.trf.xlu0
  %v115 = vpop.trf.xlu0
  %v116 = vpop.trf.xlu0
  %v117 = vpop.trf.xlu0
  %v118 = vpop.trf.xlu0
  %v119 = vpop.trf.xlu0
  %v120 = vpop.trf.xlu0
  %v121 = vpop.trf.xlu0
  %v122 = vpop.trf.xlu0
  %v123 = vpop.trf.xlu0
  %v124 = vpop.trf.xlu0
  %v125 = vpop.trf.xlu0
  %v126 = vpop.trf.xlu0
  %v127 = vpop.trf.xlu0
  %v129 = vsel %vm22, %v112, 0
  %v132 = vsel %vm22, %v113, 0
  %v135 = vsel %vm22, %v114, 0
  %v138 = vsel %vm22, %v115, 0
  %v141 = vsel %vm22, %v116, 0
  %v144 = vsel %vm22, %v117, 0
  %v147 = vsel %vm22, %v118, 0
  %v150 = vsel %vm22, %v119, 0
  %152 = vmatprep.subr.mxu0 0.0
  %153 = vmatpush1.xpose.msra.mxu0 %v24
  %154 = vmatprep.subr.mxu0 0.0
  %155 = vmatpush1.xpose.msra.mxu0 0.0
  %156 = vmatprep.subr.mxu0 0.0
  %157 = vmatpush1.xpose.msra.mxu0 0.0
  %158 = vmatprep.subr.mxu0 0.0
  %159 = vmatpush1.xpose.msra.mxu0 0.0
  %160 = vmatprep.subr.mxu0 0.0
  %161 = vmatpush1.xpose.msra.mxu0 0.0
  %162 = vmatprep.subr.mxu0 0.0
  %163 = vmatpush1.xpose.msra.mxu0 0.0
  %164 = vmatprep.subr.mxu0 0.0
  %165 = vmatpush1.xpose.msra.mxu0 0.0
  %166 = vmatprep.subr.mxu0 0.0
  %167 = vmatpush1.xpose.msra.mxu0 0.0
  %168 = vmatprep.subr.mxu0 0.0
  %169 = vmatpush1.xpose.msra.mxu0 0.0
  %170 = vmatprep.subr.mxu0 0.0
  %171 = vmatpush1.xpose.msra.mxu0 0.0
  %172 = vmatprep.subr.mxu0 0.0
  %173 = vmatpush1.xpose.msra.mxu0 0.0
  %174 = vmatprep.subr.mxu0 0.0
  %175 = vmatpush1.xpose.msra.mxu0 0.0
  %176 = vmatprep.subr.mxu0 0.0
  %177 = vmatpush1.xpose.msra.mxu0 0.0
  %178 = vmatprep.subr.mxu0 0.0
  %179 = vmatpush1.xpose.msra.mxu0 0.0
  %180 = vmatprep.subr.mxu0 0.0
  %181 = vmatpush1.xpose.msra.mxu0 0.0
  %182 = vmatprep.subr.mxu0 0.0
  %183 = vmatpush1.xpose.msra.mxu0 0.0
  %184 = vmatprep.subr.mxu0 0.0
  %185 = vmatpush1.xpose.msra.mxu0 0.0
  %186 = vmatprep.subr.mxu0 0.0
  %187 = vmatpush1.xpose.msra.mxu0 0.0
  %188 = vmatprep.subr.mxu0 0.0
  %189 = vmatpush1.xpose.msra.mxu0 0.0
  %190 = vmatprep.subr.mxu0 0.0
  %191 = vmatpush1.xpose.msra.mxu0 0.0
  %192 = vmatprep.subr.mxu0 0.0
  %193 = vmatpush1.xpose.msra.mxu0 0.0
  %194 = vmatprep.subr.mxu0 0.0
  %195 = vmatpush1.xpose.msra.mxu0 0.0
  %196 = vmatprep.subr.mxu0 0.0
  %197 = vmatpush1.xpose.msra.mxu0 0.0
  %198 = vmatprep.subr.mxu0 0.0
  %199 = vmatpush1.xpose.msra.mxu0 0.0
  %200 = vmatprep.subr.mxu0 0.0
  %201 = vmatpush1.xpose.msra.mxu0 0.0
  %202 = vmatprep.subr.mxu0 0.0
  %203 = vmatpush1.xpose.msra.mxu0 0.0
  %204 = vmatprep.subr.mxu0 0.0
  %205 = vmatpush1.xpose.msra.mxu0 0.0
  %206 = vmatprep.subr.mxu0 0.0
  %207 = vmatpush1.xpose.msra.mxu0 0.0
  %208 = vmatprep.subr.mxu0 0.0
  %209 = vmatpush1.xpose.msra.mxu0 0.0
  %210 = vmatprep.subr.mxu0 0.0
  %211 = vmatpush1.xpose.msra.mxu0 0.0
  %212 = vmatprep.subr.mxu0 0.0
  %213 = vmatpush1.xpose.msra.mxu0 0.0
  %214 = vmatprep.subr.mxu0 0.0
  %215 = vmatpush1.xpose.msra.mxu0 0.0
  %216 = vmatprep.mubr.f32.mxu0 0.0
  %217 = vmatmul.mubr.f32.gmra.mrb[0].mxu0 %v129
  %v218 = vpop.f32.mrb[0].mxu0
  %v219 = vadd.f32 0.0, %v218
  %v220 = vpop.f32.mrb[0].mxu0
  %221 = vmatprep.mubr.f32.mxu0 0.0
  %222 = vmatmul.mubr.f32.gmra.mrb[0].mxu0 %v132
  %v223 = vpop.f32.mrb[0].mxu0
  %v224 = vadd.f32 0.0, %v223
  %v225 = vpop.f32.mrb[0].mxu0
  %226 = vmatprep.mubr.f32.mxu0 0.0
  %227 = vmatmul.mubr.f32.gmra.mrb[0].mxu0 %v135
  %v228 = vpop.f32.mrb[0].mxu0
  %v229 = vadd.f32 0.0, %v228
  %v230 = vpop.f32.mrb[0].mxu0
  %231 = vmatprep.mubr.f32.mxu0 0.0
  %232 = vmatmul.mubr.f32.gmra.mrb[0].mxu0 %v138
  %v233 = vpop.f32.mrb[0].mxu0
  %v234 = vadd.f32 0.0, %v233
  %v235 = vpop.f32.mrb[0].mxu0
  %236 = vmatprep.mubr.f32.mxu0 0.0
  %237 = vmatmul.mubr.f32.gmra.mrb[0].mxu0 %v141
  %v238 = vpop.f32.mrb[0].mxu0
  %v239 = vadd.f32 0.0, %v238
  %v240 = vpop.f32.mrb[0].mxu0
  %241 = vmatprep.mubr.f32.mxu0 0.0
  %242 = vmatmul.mubr.f32.gmra.mrb[0].mxu0 %v144
  %v243 = vpop.f32.mrb[0].mxu0
  %v244 = vadd.f32 0.0, %v243
  %v245 = vpop.f32.mrb[0].mxu0
  %246 = vmatprep.mubr.f32.mxu0 0.0
  %247 = vmatmul.mubr.f32.gmra.mrb[0].mxu0 %v147
  %v248 = vpop.f32.mrb[0].mxu0
  %v249 = vadd.f32 0.0, %v248
  %v250 = vpop.f32.mrb[0].mxu0
  %251 = vmatprep.mubr.f32.mxu0 0.0
  %252 = vmatmul.mubr.f32.gmra.mrb[0].mxu0 %v150
  %v253 = vpop.f32.mrb[0].mxu0
  %v254 = vadd.f32 0.0, %v253
  %v255 = vpop.f32.mrb[0].mxu0
  %256 = vdwg.mxu0
  %v257 = vmul.f32 %v93, %v93
  %vm258 = vcmask 517120
  %v259 = vsel %vm258, %v257, 0.0
  %260 = vadd.xlane.f32.xlu0 %v259
  %v261 = vpop.xlane.xlu0 %260
  %v262 = vrot.slane %v261, 4
  %v263 = vadd.f32 %v261, %v262
  %v264 = vrot.slane %v263, 2
  %v265 = vadd.f32 %v263, %v264
  %v266 = vrot.slane %v265, 1
  %v267 = vadd.f32 %v265, %v266
  %s268 = vtos %v267
  %v269 = vstv %s268
  %v270 = vrsqrt.pop %v269
  %s271 = vtos %v270
  %v272 = vstv %s271
  %v273 = vmul.f32 %v93, %v272
  %v274 = vmul.f32 %v219, %v272
  %v275 = vmul.f32 %v224, %v272
  %v276 = vmul.f32 %v229, %v272
  %v277 = vmul.f32 %v234, %v272
  %v278 = vmul.f32 %v239, %v272
  %v279 = vmul.f32 %v244, %v272
  %v280 = vmul.f32 %v249, %v272
  %v281 = vmul.f32 %v254, %v272
  %282 = vst.msk [vmem:[%s2] sm:$0x3] %vm258, %v273
  %284 = vset.pattern.permute.xlu0 0
  %285 = vperm.xlu0 %284, %v274
  %v286 = vpop.permute.xlu0 %285
  %289 = vset.pattern.permute.xlu0 0
  %290 = vperm.xlu0 %289, %v275
  %v291 = vpop.permute.xlu0 %290
  %294 = vset.pattern.permute.xlu0 0
  %295 = vperm.xlu0 %294, %v276
  %v296 = vpop.permute.xlu0 %295
  %299 = vset.pattern.permute.xlu0 0
  %300 = vperm.xlu0 %299, %v277
  %v301 = vpop.permute.xlu0 %300
  %304 = vset.pattern.permute.xlu0 0
  %305 = vperm.xlu0 %304, %v278
  %v306 = vpop.permute.xlu0 %305
  %309 = vset.pattern.permute.xlu0 0
  %310 = vperm.xlu0 %309, %v279
  %v311 = vpop.permute.xlu0 %310
  %314 = vset.pattern.permute.xlu0 0
  %315 = vperm.xlu0 %314, %v280
  %v316 = vpop.permute.xlu0 %315
  %319 = vset.pattern.permute.xlu0 0
  %320 = vperm.xlu0 %319, %v281
  %v321 = vpop.permute.xlu0 %320
  %v323 = vlaneseq
  %v324 = vshrl.u32 %v323, 7
  %v325 = vsub.s32 0, %v324
  %v326 = vrot.slane %v273, %v325
  %v327 = vmul.f32 %v286, %v326
  %v328 = vmul.f32 %v291, %v326
  %v329 = vmul.f32 %v296, %v326
  %v330 = vmul.f32 %v301, %v326
  %v331 = vmul.f32 %v306, %v326
  %v332 = vmul.f32 %v311, %v326
  %v333 = vmul.f32 %v316, %v326
  %v334 = vmul.f32 %v321, %v326
  %335 = vset.pattern.permute.xlu0 1
  %336 = vperm.xlu0 %335, %v274
  %v337 = vpop.permute.xlu0 %336
  %339 = vset.pattern.permute.xlu0 1
  %340 = vperm.xlu0 %339, %v275
  %v341 = vpop.permute.xlu0 %340
  %343 = vset.pattern.permute.xlu0 1
  %344 = vperm.xlu0 %343, %v276
  %v345 = vpop.permute.xlu0 %344
  %347 = vset.pattern.permute.xlu0 1
  %348 = vperm.xlu0 %347, %v277
  %v349 = vpop.permute.xlu0 %348
  %351 = vset.pattern.permute.xlu0 1
  %352 = vperm.xlu0 %351, %v278
  %v353 = vpop.permute.xlu0 %352
  %355 = vset.pattern.permute.xlu0 1
  %356 = vperm.xlu0 %355, %v279
  %v357 = vpop.permute.xlu0 %356
  %359 = vset.pattern.permute.xlu0 1
  %360 = vperm.xlu0 %359, %v280
  %v361 = vpop.permute.xlu0 %360
  %363 = vset.pattern.permute.xlu0 1
  %364 = vperm.xlu0 %363, %v281
  %v365 = vpop.permute.xlu0 %364
  %v367 = vlaneseq
  %v368 = vshrl.u32 %v367, 7
  %v369 = vsub.s32 1, %v368
  %v370 = vrot.slane %v273, %v369
  %v371 = vmul.f32 %v337, %v370
  %v372 = vmul.f32 %v341, %v370
  %v373 = vmul.f32 %v345, %v370
  %v374 = vmul.f32 %v349, %v370
  %v375 = vmul.f32 %v353, %v370
  %v376 = vmul.f32 %v357, %v370
  %v377 = vmul.f32 %v361, %v370
  %v378 = vmul.f32 %v365, %v370
  %v379 = vadd.f32 %v327, %v371
  %v380 = vadd.f32 %v328, %v372
  %v381 = vadd.f32 %v329, %v373
  %v382 = vadd.f32 %v330, %v374
  %v383 = vadd.f32 %v331, %v375
  %v384 = vadd.f32 %v332, %v376
  %v385 = vadd.f32 %v333, %v377
  %v386 = vadd.f32 %v334, %v378
  %387 = vst.msk [vmem:[%s3] sm:$0xff] %vm22, %v379
  %388 = vst.msk [vmem:[%s3 + $0x8] sm:$0xff] %vm22, %v380
  %389 = vst.msk [vmem:[%s3 + $0x10] sm:$0xff] %vm22, %v381
  %390 = vst.msk [vmem:[%s3 + $0x18] sm:$0xff] %vm22, %v382
  %391 = vst.msk [vmem:[%s3 + $0x20] sm:$0xff] %vm22, %v383
  %392 = vst.msk [vmem:[%s3 + $0x28] sm:$0xff] %vm22, %v384
  %393 = vst.msk [vmem:[%s3 + $0x30] sm:$0xff] %vm22, %v385
  %394 = vst.msk [vmem:[%s3 + $0x38] sm:$0xff] %vm22, %v386
  // Predicated region
  $region10: #{symmetrize_and_double_layer.1} parent=0 // pred_check
    _
  $region11: #{symmetrize_and_double_layer.1} parent=0 // pred_check_branch
    %396 = sbr.rel (0) target = $region13
  $region12: #{symmetrize_and_double_layer.1} parent=0 // pred_region
    _
  $region13: #{symmetrize_and_double_layer.1} parent=0 // pred_fallthru
    _
  // Predicated region
  $region14: #{symmetrize_and_double_layer.1} parent=0 // pred_check
    _
  $region15: #{symmetrize_and_double_layer.1} parent=0 // pred_check_branch
    %398 = sbr.rel (0) target = $region17
  $region16: #{symmetrize_and_double_layer.1} parent=0 // pred_region
    _
  $region17: #{symmetrize_and_double_layer.1} parent=0 // pred_fallthru
    _
  // Predicated region
  $region18: #{symmetrize_and_double_layer.1} parent=0 // pred_check
    _
  $region19: #{symmetrize_and_double_layer.1} parent=0 // pred_check_branch
    %400 = sbr.rel (0) target = $region21
  $region20: #{symmetrize_and_double_layer.1} parent=0 // pred_region
    _
  $region21: #{symmetrize_and_double_layer.1} parent=0 // pred_fallthru
    _
  // Predicated region
  $region22: #{symmetrize_and_double_layer.1} parent=0 // pred_check
    _
  $region23: #{symmetrize_and_double_layer.1} parent=0 // pred_check_branch
    %402 = sbr.rel (0) target = $region25
  $region24: #{symmetrize_and_double_layer.1} parent=0 // pred_region
    _
  $region25: #{symmetrize_and_double_layer.1} parent=0 // pred_fallthru
    _

</llo_original>
